<compile_context>
chip_gen: v7x
topology: tpu7x:2x2x1
jax: 0.10.0
libtpu: 0.0.40
codegen_flags: <defaults>
</compile_context>

<pallas_src>
import functools

import jax
import jax.numpy as jnp
from jax.experimental import pallas as pl
from jax.experimental.pallas import tpu as pltpu

LANE = 128                       # vreg lane width (last dim)
SUBLANE_ALIGN = 16               # multiple of 8 (f32) and 16 (bf16) sublanes
MAX_TILE_M = 1024                # batch-tile cap (perf review: 512-1024)
VMEM_TARGET_BYTES = 36 * 1024 * 1024     # working-set target (v7x VMEM = 64 MiB)
VMEM_LIMIT_CAP = 48 * 1024 * 1024        # never request more scoped VMEM than this
RESIDENT_WEIGHT_LIMIT = 20 * 1024 * 1024 # above this, stream the hidden dim


def _round_up(n, m):
    return (n + m - 1) // m * m


# ---------------------------------------------------------------------------
# Kernels
# ---------------------------------------------------------------------------
def _mlp_resident_kernel(x_ref, w1_ref, b1_ref, w2_ref, b2_ref, out_ref,
                         *, compute_dtype):
    """Fused fc1 -> ReLU -> fc2 with both weight matrices resident in VMEM."""
    x = x_ref[...].astype(compute_dtype)          # in-kernel cast (VPU slot, ~free)
    h = jnp.dot(x, w1_ref[...], preferred_element_type=jnp.float32)
    h = jnp.maximum(h + b1_ref[...], 0.0)         # f32 bias + ReLU epilogue
    y = jnp.dot(h.astype(compute_dtype), w2_ref[...],
                preferred_element_type=jnp.float32)
    out_ref[...] = (y + b2_ref[...]).astype(out_ref.dtype)


def _mlp_hidden_tiled_kernel(x_ref, w1_ref, b1_ref, w2_ref, b2_ref, out_ref,
                             acc_ref, *, compute_dtype):
    """Fallback when the weights don't fit resident: the hidden dim is streamed
    as a reduction axis with an f32 VMEM accumulator."""
    h_step = pl.program_id(1)

    @pl.when(h_step == 0)
    def _init():
        acc_ref[...] = jnp.zeros_like(acc_ref)

    x = x_ref[...].astype(compute_dtype)
    h = jnp.dot(x, w1_ref[...], preferred_element_type=jnp.float32)
    h = jnp.maximum(h + b1_ref[...], 0.0)         # ReLU is per-hidden-unit -> tileable
    acc_ref[...] += jnp.dot(h.astype(compute_dtype), w2_ref[...],
                            preferred_element_type=jnp.float32)

    @pl.when(h_step == pl.num_programs(1) - 1)
    def _finalize():
        out_ref[...] = (acc_ref[...] + b2_ref[...]).astype(out_ref.dtype)


# ---------------------------------------------------------------------------
# Parameter preparation (one-time, hoisted out of the per-call path)
# ---------------------------------------------------------------------------
def init_params(key, input_size, hidden_size, num_classes, dtype=jnp.float32):
    """nn.Linear-style init; weight layout is [in, out] (transpose of torch)."""
    k1, k2, k3, k4 = jax.random.split(key, 4)
    lim1 = 1.0 / jnp.sqrt(input_size)
    lim2 = 1.0 / jnp.sqrt(hidden_size)
    w1 = jax.random.uniform(k1, (input_size, hidden_size), dtype, -lim1, lim1)
    b1 = jax.random.uniform(k2, (1, hidden_size), dtype, -lim1, lim1)
    w2 = jax.random.uniform(k3, (hidden_size, num_classes), dtype, -lim2, lim2)
    b2 = jax.random.uniform(k4, (1, num_classes), dtype, -lim2, lim2)
    return w1, b1, w2, b2


def prepare_params(w1, b1, w2, b2, *, compute_dtype=jnp.bfloat16,
                   hidden_tile=None,
                   max_resident_weight_bytes=RESIDENT_WEIGHT_LIMIT):
    """Cast weights to the compute dtype once (bf16 by default: bf16-native MXU,
    half the HBM weight bytes); biases stay f32 for the f32 epilogue.  If the
    weights are too large to sit resident in VMEM (or `hidden_tile` is given),
    the hidden dim is zero-padded to a multiple of the hidden tile so the
    fallback kernel can stream it.  Use compute_dtype=jnp.float32 for
    PyTorch-exact numerics."""
    compute_dtype = jnp.dtype(compute_dtype)
    K, H = w1.shape
    N = w2.shape[1]
    w_bytes = compute_dtype.itemsize

    # Double-buffered resident footprint of weights + biases.
    resident_bytes = 2 * ((K * H + H * N) * w_bytes + (H + N) * 4)
    use_hidden_tiling = (hidden_tile is not None
                         or resident_bytes > max_resident_weight_bytes)

    tile_h = None
    b1 = jnp.asarray(b1).reshape(1, -1)
    b2 = jnp.asarray(b2).reshape(1, -1)
    if use_hidden_tiling:
        if hidden_tile is None:
            # Lane-aligned hidden tile whose double-buffered weight slices fit.
            budget = max(max_resident_weight_bytes, 4 * 1024 * 1024)
            rows = budget // (2 * (K + N) * w_bytes + 8)
            hidden_tile = max(LANE, rows // LANE * LANE)
        if hidden_tile >= H:
            tile_h = H                              # one step, full (unpadded) dim
        else:
            tile_h = _round_up(int(hidden_tile), LANE)
            if tile_h >= H:
                tile_h = H
        Hp = _round_up(H, tile_h)
        if Hp != H:
            # Zero padding is exact: padded hidden units see zero weights and
            # zero bias -> ReLU(0) = 0 -> contribute nothing to fc2.
            w1 = jnp.pad(w1, ((0, 0), (0, Hp - H)))
            b1 = jnp.pad(b1, ((0, 0), (0, Hp - H)))
            w2 = jnp.pad(w2, ((0, Hp - H), (0, 0)))

    return dict(
        w1=jnp.asarray(w1, compute_dtype),
        b1=jnp.asarray(b1, jnp.float32),
        w2=jnp.asarray(w2, compute_dtype),
        b2=jnp.asarray(b2, jnp.float32),
        compute_dtype=compute_dtype,
        hidden_tile=tile_h,
    )


# ---------------------------------------------------------------------------
# Forward
# ---------------------------------------------------------------------------
def _choose_tile_m(B, per_row_bytes, fixed_bytes, requested):
    if requested is not None:
        tile = _round_up(max(int(requested), 1), SUBLANE_ALIGN)
        return B if tile >= B else tile
    avail = max(VMEM_TARGET_BYTES - fixed_bytes, SUBLANE_ALIGN * per_row_bytes)
    tile = min(MAX_TILE_M, max(SUBLANE_ALIGN, avail // max(per_row_bytes, 1)))
    if B >= 256:      # keep >= 2 grid steps so v7x's 2 TensorCores both get work
        tile = min(tile, _round_up(-(-B // 2), SUBLANE_ALIGN))
    if B <= tile:
        return B      # single full-batch block (full dims are always legal)
    n_tiles = -(-B // tile)
    return _round_up(-(-B // n_tiles), SUBLANE_ALIGN)   # balance tiles, least padding


def meta_model_forward(x, params, *, tile_m=None, out_dtype=None):
    """x: [B, input_size] -> [B, num_classes] (fused fc1 -> ReLU -> fc2)."""
    w1, b1, w2, b2 = params["w1"], params["b1"], params["w2"], params["b2"]
    compute_dtype = params["compute_dtype"]
    tile_h = params["hidden_tile"]

    B, K = x.shape
    Kw, H = w1.shape
    N = w2.shape[1]
    assert K == Kw, f"input feature mismatch: x has {K}, fc1 expects {Kw}"
    out_dtype = jnp.dtype(out_dtype) if out_dtype is not None else x.dtype

    x_bytes = jnp.dtype(x.dtype).itemsize
    w_bytes = jnp.dtype(compute_dtype).itemsize
    o_bytes = jnp.dtype(out_dtype).itemsize

    # VMEM footprint model: resident (double-buffered) weight/bias bytes plus
    # the per-batch-row working set (streamed x/out tiles + in-kernel temps).
    h_block = H if tile_h is None else tile_h
    if tile_h is None:
        fixed_bytes = 2 * ((K * H + H * N) * w_bytes + (H + N) * 4)
    else:
        fixed_bytes = 2 * ((K + N) * tile_h * w_bytes + (tile_h + N) * 4)
    per_row_bytes = (2 * K * x_bytes + 2 * N * o_bytes
                     + K * w_bytes + h_block * (4 + w_bytes)
                     + 2 * N * 4)
    tile_m = _choose_tile_m(B, per_row_bytes, fixed_bytes, tile_m)

    Bp = _round_up(B, tile_m)
    xk = x if Bp == B else jnp.pad(x, ((0, Bp - B), (0, 0)))   # pad only if needed

    footprint = fixed_bytes + tile_m * per_row_bytes
    vmem_limit = int(min(max(footprint + 8 * 1024 * 1024, 32 * 1024 * 1024),
                         VMEM_LIMIT_CAP))
    cost = pl.CostEstimate(
        flops=2 * Bp * (K * H + H * N),
        transcendentals=0,
        bytes_accessed=int(Bp * K * x_bytes + (K * H + H * N) * w_bytes
                           + (H + N) * 4 + Bp * N * o_bytes),
    )
    n_batch = Bp // tile_m

    if tile_h is None:
        out_p = pl.pallas_call(
            functools.partial(_mlp_resident_kernel, compute_dtype=compute_dtype),
            out_shape=jax.ShapeDtypeStruct((Bp, N), out_dtype),
            grid=(n_batch,),
            in_specs=[
                pl.BlockSpec((tile_m, K), lambda i: (i, 0)),   # batch-streamed x
                pl.BlockSpec((K, H), lambda i: (0, 0)),        # resident weights
                pl.BlockSpec((1, H), lambda i: (0, 0)),
                pl.BlockSpec((H, N), lambda i: (0, 0)),
                pl.BlockSpec((1, N), lambda i: (0, 0)),
            ],
            out_specs=pl.BlockSpec((tile_m, N), lambda i: (i, 0)),
            compiler_params=pltpu.CompilerParams(
                dimension_semantics=("parallel",),
                vmem_limit_bytes=vmem_limit,
            ),
            cost_estimate=cost,
        )(xk, w1, b1, w2, b2)
    else:
        n_hidden = H // tile_h
        out_p = pl.pallas_call(
            functools.partial(_mlp_hidden_tiled_kernel, compute_dtype=compute_dtype),
            out_shape=jax.ShapeDtypeStruct((Bp, N), out_dtype),
            grid=(n_batch, n_hidden),
            in_specs=[
                pl.BlockSpec((tile_m, K), lambda i, h: (i, 0)),   # resident per batch tile
                pl.BlockSpec((K, tile_h), lambda i, h: (0, h)),   # streamed over hidden
                pl.BlockSpec((1, tile_h), lambda i, h: (0, h)),
                pl.BlockSpec((tile_h, N), lambda i, h: (h, 0)),
                pl.BlockSpec((1, N), lambda i, h: (0, 0)),
            ],
            out_specs=pl.BlockSpec((tile_m, N), lambda i, h: (i, 0)),
            scratch_shapes=[pltpu.VMEM((tile_m, N), jnp.float32)],
            compiler_params=pltpu.CompilerParams(
                dimension_semantics=("parallel", "arbitrary"),
                vmem_limit_bytes=vmem_limit,
            ),
            cost_estimate=cost,
        )(xk, w1, b1, w2, b2)

    return out_p if Bp == B else out_p[:B]


# ---------------------------------------------------------------------------
# Self-test
# ---------------------------------------------------------------------------
if __name__ == "__main__":
    def ref_forward(x, w1, b1, w2, b2):
        return jnp.maximum(x @ w1 + b1, 0.0) @ w2 + b2

    input_size, hidden_size, num_classes = 32, 32, 8
    key = jax.random.PRNGKey(0)
    kx, kp, kx2, kx3, kp2 = jax.random.split(key, 5)
    w1, b1, w2, b2 = init_params(kp, input_size, hidden_size, num_classes)

    # 1) PyTorch-exact f32 path, small batch matching the module spec.
    x = jax.random.normal(kx, (8, input_size), jnp.float32)
    p_f32 = prepare_params(w1, b1, w2, b2, compute_dtype=jnp.float32)
    out = meta_model_forward(x, p_f32)
    jax.block_until_ready(out)
    r = ref_forward(x, w1, b1, w2, b2)
    assert out.shape == (8, num_classes)
    assert jnp.allclose(out, r, atol=1e-5, rtol=1e-5)

    # 2) Default path: bf16 matmul operands, f32 accumulate + epilogue.
    p_bf16 = prepare_params(w1, b1, w2, b2)
    out_bf = meta_model_forward(x, p_bf16)
    jax.block_until_ready(out_bf)
    assert jnp.allclose(out_bf, r, atol=1e-1, rtol=1e-1)

    # 3) Multi-tile batch grid with non-divisible batch (pad + slice), f32-exact.
    xb = jax.random.normal(kx2, (100, input_size), jnp.float32)
    out_b = meta_model_forward(xb, p_f32, tile_m=64)
    jax.block_until_ready(out_b)
    assert out_b.shape == (100, num_classes)
    assert jnp.allclose(out_b, ref_forward(xb, w1, b1, w2, b2), atol=1e-4, rtol=1e-4)

    # 4) Hidden-dim-tiled fallback (forced), exercises the f32 VMEM accumulator.
    K2, H2, N2 = 64, 512, 16
    w1b, b1b, w2b, b2b = init_params(kp2, K2, H2, N2)
    xf = jax.random.normal(kx3, (64, K2), jnp.float32)
    p_fb = prepare_params(w1b, b1b, w2b, b2b, compute_dtype=jnp.float32,
                          hidden_tile=128, max_resident_weight_bytes=0)
    assert p_fb["hidden_tile"] == 128
    out_fb = meta_model_forward(xf, p_fb)
    jax.block_until_ready(out_fb)
    assert jnp.allclose(out_fb, ref_forward(xf, w1b, b1b, w2b, b2b),
                        atol=1e-3, rtol=1e-3)

    print("KERNEL_OK")
</pallas_src>

<mosaic_0001>
module attributes {stable_mosaic.version = 11 : i64} {
  func.func @_mlp_resident_kernel(%arg0: i32, %arg1: memref<8x32xf32, #tpu.memory_space<vmem>>, %arg2: memref<32x32xf32, #tpu.memory_space<vmem>>, %arg3: memref<1x32xf32, #tpu.memory_space<vmem>>, %arg4: memref<32x8xf32, #tpu.memory_space<vmem>>, %arg5: memref<1x8xf32, #tpu.memory_space<vmem>>, %arg6: memref<8x8xf32, #tpu.memory_space<vmem>>) attributes {dimension_semantics = [#tpu.dimension_semantics<parallel>], iteration_bounds = array<i64: 1>, scalar_prefetch = 0 : i64, scratch_operands = 0 : i64, tpu.core_type = #tpu.core_type<tc>, window_params = [{transform_indices = @transform_0, window_bounds = array<i64: 8, 32>}, {pipeline_mode = #tpu.pipeline_mode<synchronous>, transform_indices = @transform_1, window_bounds = array<i64: 32, 32>}, {pipeline_mode = #tpu.pipeline_mode<synchronous>, transform_indices = @transform_2, window_bounds = array<i64: 1, 32>}, {pipeline_mode = #tpu.pipeline_mode<synchronous>, transform_indices = @transform_3, window_bounds = array<i64: 32, 8>}, {pipeline_mode = #tpu.pipeline_mode<synchronous>, transform_indices = @transform_4, window_bounds = array<i64: 1, 8>}, {transform_indices = @transform_5, window_bounds = array<i64: 8, 8>}]} {
    %c0 = arith.constant 0 : index
    %c0_0 = arith.constant 0 : index
    %0 = vector.load %arg1[%c0, %c0_0] : memref<8x32xf32, #tpu.memory_space<vmem>>, vector<8x32xf32>
    %c0_1 = arith.constant 0 : index
    %c0_2 = arith.constant 0 : index
    %1 = vector.load %arg2[%c0_1, %c0_2] : memref<32x32xf32, #tpu.memory_space<vmem>>, vector<32x32xf32>
    %cst = arith.constant dense<0.000000e+00> : vector<8x32xf32>
    %2 = tpu.matmul %0, %1, %cst {dimension_numbers = #tpu.dot_dimension_numbers<[1], [0], [0], [1], [0, 0, 1, 1], [], []>} : vector<8x32xf32>, vector<32x32xf32>, vector<8x32xf32> -> vector<8x32xf32>
    %c0_3 = arith.constant 0 : index
    %c0_4 = arith.constant 0 : index
    %3 = vector.load %arg3[%c0_3, %c0_4] : memref<1x32xf32, #tpu.memory_space<vmem>>, vector<1x32xf32>
    %4 = vector.broadcast %3 : vector<1x32xf32> to vector<8x32xf32>
    %5 = arith.addf %2, %4 : vector<8x32xf32>
    %cst_5 = arith.constant 0.000000e+00 : f32
    %6 = vector.broadcast %cst_5 : f32 to vector<8x32xf32>
    %7 = arith.maximumf %5, %6 : vector<8x32xf32>
    %c0_6 = arith.constant 0 : index
    %c0_7 = arith.constant 0 : index
    %8 = vector.load %arg4[%c0_6, %c0_7] : memref<32x8xf32, #tpu.memory_space<vmem>>, vector<32x8xf32>
    %cst_8 = arith.constant dense<0.000000e+00> : vector<8x8xf32>
    %9 = tpu.matmul %7, %8, %cst_8 {dimension_numbers = #tpu.dot_dimension_numbers<[1], [0], [0], [1], [0, 0, 1, 1], [], []>} : vector<8x32xf32>, vector<32x8xf32>, vector<8x8xf32> -> vector<8x8xf32>
    %c0_9 = arith.constant 0 : index
    %c0_10 = arith.constant 0 : index
    %10 = vector.load %arg5[%c0_9, %c0_10] : memref<1x8xf32, #tpu.memory_space<vmem>>, vector<1x8xf32>
    %11 = vector.broadcast %10 : vector<1x8xf32> to vector<8x8xf32>
    %12 = arith.addf %9, %11 : vector<8x8xf32>
    %c0_11 = arith.constant 0 : index
    %c0_12 = arith.constant 0 : index
    %13 = vector.load %arg6[%c0_11, %c0_12] : memref<8x8xf32, #tpu.memory_space<vmem>>, vector<8x8xf32>
    tpu.vector_store %arg6[%c0_11, %c0_12], %12 {strides = array<i32>} : memref<8x8xf32, #tpu.memory_space<vmem>>, vector<8x8xf32>,
    return
  }
  func.func @transform_0(%arg0: i32) -> (i32, i32) {
    %c0_i32 = arith.constant 0 : i32
    %c0_i32_0 = arith.constant 0 : i32
    return %arg0, %c0_i32 : i32, i32
  }
  func.func @transform_1(%arg0: i32) -> (i32, i32) {
    %c0_i32 = arith.constant 0 : i32
    %c0_i32_0 = arith.constant 0 : i32
    %c0_i32_1 = arith.constant 0 : i32
    return %c0_i32, %c0_i32_0 : i32, i32
  }
  func.func @transform_2(%arg0: i32) -> (i32, i32) {
    %c0_i32 = arith.constant 0 : i32
    %c0_i32_0 = arith.constant 0 : i32
    %c0_i32_1 = arith.constant 0 : i32
    return %c0_i32, %c0_i32_0 : i32, i32
  }
  func.func @transform_3(%arg0: i32) -> (i32, i32) {
    %c0_i32 = arith.constant 0 : i32
    %c0_i32_0 = arith.constant 0 : i32
    %c0_i32_1 = arith.constant 0 : i32
    return %c0_i32, %c0_i32_0 : i32, i32
  }
  func.func @transform_4(%arg0: i32) -> (i32, i32) {
    %c0_i32 = arith.constant 0 : i32
    %c0_i32_0 = arith.constant 0 : i32
    %c0_i32_1 = arith.constant 0 : i32
    return %c0_i32, %c0_i32_0 : i32, i32
  }
  func.func @transform_5(%arg0: i32) -> (i32, i32) {
    %c0_i32 = arith.constant 0 : i32
    %c0_i32_0 = arith.constant 0 : i32
    return %arg0, %c0_i32 : i32, i32
  }
}

</mosaic_0001>

<llo_original>
// kernel: tpu_custom_call.1
$region0: #{tpu_custom_call.1}
  #allocation0 [shape = 'u32[]', space=smem, size = 0x4, offset = 0x4, fixed_abs, tag = 'smem constant byte address 0x4 - core index']
  #allocation1 [shape = 'u32[144,128]{1,0:T(1,128)}', space=vmem, size = 0x12000, scoped, tag = 'internal scratch']
  %s0 = inlined_call_operand.vmem [shape: f32[8,32], index: 0, kind: input, shape index: {}]
  %s1 = inlined_call_operand.vmem [shape: f32[32,32], index: 1, kind: input, shape index: {}]
  %s2 = inlined_call_operand.vmem [shape: f32[1,32], index: 2, kind: input, shape index: {}]
  %s3 = inlined_call_operand.vmem [shape: f32[32,8], index: 3, kind: input, shape index: {}]
  %s4 = inlined_call_operand.vmem [shape: f32[1,8], index: 4, kind: input, shape index: {}]
  %s5 = inlined_call_operand.hbm [shape: f32[8,8], index: 5, kind: output, shape index: {}]
  %s6 = sld [smem:[#allocation0]]
  $region30: #{tpu_custom_call.1} parent=0
    _
  %s8 = ssub.s32 1, %s6
  %s9 = scalar_select 0, %s8, %s6
  $region1: #{tpu_custom_call.1} parent=0
    #allocation2 [shape = 'u8[4096]{0}', space=vmem, size = 0x1000, scoped, tag = 'output window, operand 0, single buffered']
    #allocation3 [shape = 's32[1]{0}', space=sflag, size = 0x4, scoped, tag = 'scoped memory for tpu_custom_call.1']
    %10 = vsyncpa [#allocation3], 0
    // Predicated region
    $region2: #{tpu_custom_call.1} parent=1 // pred_check
      _
    $region3: #{tpu_custom_call.1} parent=1 // pred_check_branch
      %12 = sbr.rel (0) target = $region5
    $region4: #{tpu_custom_call.1} parent=1 // pred_region
      _
    $region5: #{tpu_custom_call.1} parent=1 // pred_fallthru
      _
    // Predicated region
    $region6: #{tpu_custom_call.1} parent=1 // pred_check
      _
    $region7: #{tpu_custom_call.1} parent=1 // pred_check_branch
      %14 = sbr.rel (0) target = $region9
    $region8: #{tpu_custom_call.1} parent=1 // pred_region
      _
    $region9: #{tpu_custom_call.1} parent=1 // pred_fallthru
      _
    // Predicated region
    $region10: #{tpu_custom_call.1} parent=1 // pred_check
      _
    $region11: #{tpu_custom_call.1} parent=1 // pred_check_branch
      %16 = sbr.rel (0) target = $region13
    $region12: #{tpu_custom_call.1} parent=1 // pred_region
      _
    $region13: #{tpu_custom_call.1} parent=1 // pred_fallthru
      _
    // Predicated region
    $region14: #{tpu_custom_call.1} parent=1 // pred_check
      _
    $region15: #{tpu_custom_call.1} parent=1 // pred_check_branch
      %18 = sbr.rel (0) target = $region17
    $region16: #{tpu_custom_call.1} parent=1 // pred_region
      _
    $region17: #{tpu_custom_call.1} parent=1 // pred_fallthru
      _
    // Predicated region
    $region18: #{tpu_custom_call.1} parent=1 // pred_check
      _
    $region19: #{tpu_custom_call.1} parent=1 // pred_check_branch
      %20 = sbr.rel (0) target = $region21
    $region20: #{tpu_custom_call.1} parent=1 // pred_region
      _
    $region21: #{tpu_custom_call.1} parent=1 // pred_fallthru
      _
    %v21 = vld [vmem:[%s0] sm:$0xff]
    %v22 = vld [vmem:[%s1] sm:$0xff]
    %v23 = vld [vmem:[%s1 + $0x8] sm:$0xff]
    %v24 = vld [vmem:[%s1 + $0x10] sm:$0xff]
    %v25 = vld [vmem:[%s1 + $0x18] sm:$0xff]
    %v26 = vld [vmem:[%s2] sm:$0x1]
    %v28 = vlaneseq
    %v29 = vshrl.u32 %v28, 7
    %v30 = vsub.s32 0, %v29
    %v31 = vrot.slane %v26, %v30
    %vm33 = vcmask 261120
    %v35 = vsel %vm33, %v21, 0
    %37 = vmatprep.subr.mxu0 0.0
    %38 = vmatpush1.msra.mxu0 %v22
    %39 = vmatprep.subr.mxu0 0.0
    %40 = vmatpush1.msra.mxu0 %v23
    %41 = vmatprep.subr.mxu0 0.0
    %42 = vmatpush1.msra.mxu0 %v24
    %43 = vmatprep.subr.mxu0 0.0
    %44 = vmatpush1.msra.mxu0 %v25
    %45 = vmatprep.subr.mxu0 0.0
    %46 = vmatpush1.msra.mxu0 0.0
    %47 = vmatprep.subr.mxu0 0.0
    %48 = vmatpush1.msra.mxu0 0.0
    %49 = vmatprep.subr.mxu0 0.0
    %50 = vmatpush1.msra.mxu0 0.0
    %51 = vmatprep.subr.mxu0 0.0
    %52 = vmatpush1.msra.mxu0 0.0
    %53 = vmatprep.subr.mxu0 0.0
    %54 = vmatpush1.msra.mxu0 0.0
    %55 = vmatprep.subr.mxu0 0.0
    %56 = vmatpush1.msra.mxu0 0.0
    %57 = vmatprep.subr.mxu0 0.0
    %58 = vmatpush1.msra.mxu0 0.0
    %59 = vmatprep.subr.mxu0 0.0
    %60 = vmatpush1.msra.mxu0 0.0
    %61 = vmatprep.subr.mxu0 0.0
    %62 = vmatpush1.msra.mxu0 0.0
    %63 = vmatprep.subr.mxu0 0.0
    %64 = vmatpush1.msra.mxu0 0.0
    %65 = vmatprep.subr.mxu0 0.0
    %66 = vmatpush1.msra.mxu0 0.0
    %67 = vmatprep.subr.mxu0 0.0
    %68 = vmatpush1.msra.mxu0 0.0
    %69 = vmatprep.subr.mxu0 0.0
    %70 = vmatpush1.msra.mxu0 0.0
    %71 = vmatprep.subr.mxu0 0.0
    %72 = vmatpush1.msra.mxu0 0.0
    %73 = vmatprep.subr.mxu0 0.0
    %74 = vmatpush1.msra.mxu0 0.0
    %75 = vmatprep.subr.mxu0 0.0
    %76 = vmatpush1.msra.mxu0 0.0
    %77 = vmatprep.subr.mxu0 0.0
    %78 = vmatpush1.msra.mxu0 0.0
    %79 = vmatprep.subr.mxu0 0.0
    %80 = vmatpush1.msra.mxu0 0.0
    %81 = vmatprep.subr.mxu0 0.0
    %82 = vmatpush1.msra.mxu0 0.0
    %83 = vmatprep.subr.mxu0 0.0
    %84 = vmatpush1.msra.mxu0 0.0
    %85 = vmatprep.subr.mxu0 0.0
    %86 = vmatpush1.msra.mxu0 0.0
    %87 = vmatprep.subr.mxu0 0.0
    %88 = vmatpush1.msra.mxu0 0.0
    %89 = vmatprep.subr.mxu0 0.0
    %90 = vmatpush1.msra.mxu0 0.0
    %91 = vmatprep.subr.mxu0 0.0
    %92 = vmatpush1.msra.mxu0 0.0
    %93 = vmatprep.subr.mxu0 0.0
    %94 = vmatpush1.msra.mxu0 0.0
    %95 = vmatprep.subr.mxu0 0.0
    %96 = vmatpush1.msra.mxu0 0.0
    %97 = vmatprep.subr.mxu0 0.0
    %98 = vmatpush1.msra.mxu0 0.0
    %99 = vmatprep.subr.mxu0 0.0
    %100 = vmatpush1.msra.mxu0 0.0
    %101 = vmatprep.mubr.f32.mxu0 0.0
    %102 = vmatmul.mubr.f32.gmra.mrb[0].mxu0 %v35
    %v103 = vpop.f32.mrb[0].mxu0
    %v104 = vadd.f32 %v31, %v103
    %v105 = vpop.f32.mrb[0].mxu0
    %106 = vdwg.mxu0
    %v107 = vmax.f32 %v104, 0.0
    %v108 = vld [vmem:[%s3] sm:$0xff]
    %v109 = vld [vmem:[%s3 + $0x8] sm:$0xff]
    %v110 = vld [vmem:[%s3 + $0x10] sm:$0xff]
    %v111 = vld [vmem:[%s3 + $0x18] sm:$0xff]
    %v112 = vld [vmem:[%s4] sm:$0x1]
    %v114 = vlaneseq
    %v115 = vshrl.u32 %v114, 7
    %v116 = vsub.s32 0, %v115
    %v117 = vrot.slane %v112, %v116
    %v120 = vsel %vm33, %v107, 0
    %122 = vmatprep.subr.mxu0 0.0
    %123 = vmatpush1.msra.mxu0 %v108
    %124 = vmatprep.subr.mxu0 0.0
    %125 = vmatpush1.msra.mxu0 %v109
    %126 = vmatprep.subr.mxu0 0.0
    %127 = vmatpush1.msra.mxu0 %v110
    %128 = vmatprep.subr.mxu0 0.0
    %129 = vmatpush1.msra.mxu0 %v111
    %130 = vmatprep.subr.mxu0 0.0
    %131 = vmatpush1.msra.mxu0 0.0
    %132 = vmatprep.subr.mxu0 0.0
    %133 = vmatpush1.msra.mxu0 0.0
    %134 = vmatprep.subr.mxu0 0.0
    %135 = vmatpush1.msra.mxu0 0.0
    %136 = vmatprep.subr.mxu0 0.0
    %137 = vmatpush1.msra.mxu0 0.0
    %138 = vmatprep.subr.mxu0 0.0
    %139 = vmatpush1.msra.mxu0 0.0
    %140 = vmatprep.subr.mxu0 0.0
    %141 = vmatpush1.msra.mxu0 0.0
    %142 = vmatprep.subr.mxu0 0.0
    %143 = vmatpush1.msra.mxu0 0.0
    %144 = vmatprep.subr.mxu0 0.0
    %145 = vmatpush1.msra.mxu0 0.0
    %146 = vmatprep.subr.mxu0 0.0
    %147 = vmatpush1.msra.mxu0 0.0
    %148 = vmatprep.subr.mxu0 0.0
    %149 = vmatpush1.msra.mxu0 0.0
    %150 = vmatprep.subr.mxu0 0.0
    %151 = vmatpush1.msra.mxu0 0.0
    %152 = vmatprep.subr.mxu0 0.0
    %153 = vmatpush1.msra.mxu0 0.0
    %154 = vmatprep.subr.mxu0 0.0
    %155 = vmatpush1.msra.mxu0 0.0
    %156 = vmatprep.subr.mxu0 0.0
    %157 = vmatpush1.msra.mxu0 0.0
    %158 = vmatprep.subr.mxu0 0.0
    %159 = vmatpush1.msra.mxu0 0.0
    %160 = vmatprep.subr.mxu0 0.0
    %161 = vmatpush1.msra.mxu0 0.0
    %162 = vmatprep.subr.mxu0 0.0
    %163 = vmatpush1.msra.mxu0 0.0
    %164 = vmatprep.subr.mxu0 0.0
    %165 = vmatpush1.msra.mxu0 0.0
    %166 = vmatprep.subr.mxu0 0.0
    %167 = vmatpush1.msra.mxu0 0.0
    %168 = vmatprep.subr.mxu0 0.0
    %169 = vmatpush1.msra.mxu0 0.0
    %170 = vmatprep.subr.mxu0 0.0
    %171 = vmatpush1.msra.mxu0 0.0
    %172 = vmatprep.subr.mxu0 0.0
    %173 = vmatpush1.msra.mxu0 0.0
    %174 = vmatprep.subr.mxu0 0.0
    %175 = vmatpush1.msra.mxu0 0.0
    %176 = vmatprep.subr.mxu0 0.0
    %177 = vmatpush1.msra.mxu0 0.0
    %178 = vmatprep.subr.mxu0 0.0
    %179 = vmatpush1.msra.mxu0 0.0
    %180 = vmatprep.subr.mxu0 0.0
    %181 = vmatpush1.msra.mxu0 0.0
    %182 = vmatprep.subr.mxu0 0.0
    %183 = vmatpush1.msra.mxu0 0.0
    %184 = vmatprep.subr.mxu0 0.0
    %185 = vmatpush1.msra.mxu0 0.0
    %186 = vmatprep.mubr.f32.mxu0 0.0
    %187 = vmatmul.mubr.f32.gmra.mrb[0].mxu0 %v120
    %v188 = vpop.f32.mrb[0].mxu0
    %v189 = vadd.f32 %v117, %v188
    %v190 = vpop.f32.mrb[0].mxu0
    %191 = vdwg.mxu0
    %vm192 = vcmask 64512
    %193 = vst.msk [vmem:[#allocation2] sm:$0xff] %vm192, %v189
    // Predicated region
    $region22: #{tpu_custom_call.1} parent=1 // pred_check
      _
    $region23: #{tpu_custom_call.1} parent=1 // pred_check_branch
      %195 = sbr.rel (0) target = $region25
    $region24: #{tpu_custom_call.1} parent=1 // pred_region
      %s197 = ssub.s32 128, 128
      %198 = vsyncadd [#allocation3], %s197
      %s200 = sshll.u32 [#allocation2], 4
      %s201 = int_to_ptr.vmem [resolvable:$true] %s200
      %203 = dma.vmem_to_hbm [thread:$0]  %s201, 128, %s5, [#allocation3]
    $region25: #{tpu_custom_call.1} parent=1 // pred_fallthru
      _
    // Predicated region
    $region26: #{tpu_custom_call.1} parent=1 // pred_check
      _
    $region27: #{tpu_custom_call.1} parent=1 // pred_check_branch
      %205 = sbr.rel (0) target = $region29
    $region28: #{tpu_custom_call.1} parent=1 // pred_region
      %206 = dma.done [#allocation3], 128
    $region29: #{tpu_custom_call.1} parent=1 // pred_fallthru
      _
    %207 = vsyncpa [#allocation3], 1

</llo_original>
